<compile_context>
chip_gen: v7x
topology: tpu7x:2x2x1
jax: 0.10.0
libtpu: 0.0.40
codegen_flags: <defaults>
</compile_context>

<pallas_src>
import jax
import jax.numpy as jnp
from jax.experimental import pallas as pl
from jax.experimental.pallas import tpu as pltpu  # noqa: F401  (kept for TPU-specific tuning)


S_SIZE = 4       # CartPole-v0 observation dim
A_SIZE = 2       # CartPole-v0 action dim
HIDDEN = 64
PAD_OUT = 128    # lane-dense output width (real logits in cols [0, A_SIZE))

# Packed-parameter buffer row layout (lane dim = 128):
#   rows [0,   64)  cols [0,128) : W3 padded  (64 x 128, cols >= A_SIZE are zero)
#   rows [64, 128)  cols [0, 64) : W2         (64 x 64)
#   rows [128,132)  cols [0, 64) : W1         ( 4 x 64)
#   row   132       cols [0, 64) : b1
#   row   133       cols [0, 64) : b2
#   row   134       cols [0,128) : b3 padded
R_W3 = 0
R_W2 = HIDDEN                     # 64
R_W1 = 2 * HIDDEN                 # 128
R_B1 = 2 * HIDDEN + S_SIZE        # 132
R_B2 = R_B1 + 1                   # 133
R_B3 = R_B2 + 1                   # 134
PACK_ROWS = 136                   # 135 rounded up to a multiple of 8 sublanes


def mlp_kernel(x_ref, p_ref, q_ref):
    x = x_ref[...].astype(jnp.float32)                      # [B, 4]

    w1 = p_ref[R_W1:R_W1 + S_SIZE, 0:HIDDEN]                # [4, 64]
    b1 = p_ref[R_B1:R_B1 + 1, 0:HIDDEN]                     # [1, 64]
    w2 = p_ref[R_W2:R_W2 + HIDDEN, 0:HIDDEN]                # [64, 64]
    b2 = p_ref[R_B2:R_B2 + 1, 0:HIDDEN]                     # [1, 64]
    w3 = p_ref[R_W3:R_W3 + HIDDEN, :]                       # [64, 128] (zero-padded)
    b3 = p_ref[R_B3:R_B3 + 1, :]                            # [1, 128]  (zero-padded)

    # Layer 1 on the VPU: unrolled K=4 broadcast-multiply-add (skips an MXU round-trip).
    h1 = b1
    for k in range(S_SIZE):
        h1 = h1 + x[:, k:k + 1] * w1[k:k + 1, :]            # [B, 64]
    h1 = jnp.maximum(h1, 0.0)

    # Layer 2: 64x64 matmul on the MXU + ReLU.
    h2 = jnp.dot(h1, w2, preferred_element_type=jnp.float32) + b2
    h2 = jnp.maximum(h2, 0.0)

    # Layer 3: 64x128 (padded) matmul; lane-dense [B, 128] store.
    q = jnp.dot(h2, w3, preferred_element_type=jnp.float32) + b3
    q_ref[...] = q.astype(q_ref.dtype)


def net_forward(x, packed_params):
    """x: [B, s_size] float32 -> q: [B, a_size] float32."""
    B = x.shape[0]
    full = lambda shape: pl.BlockSpec(shape, lambda: (0,) * len(shape))

    q_pad = pl.pallas_call(
        mlp_kernel,
        out_shape=jax.ShapeDtypeStruct((B, PAD_OUT), jnp.float32),
        grid=(),
        in_specs=[full(x.shape), full(packed_params.shape)],
        out_specs=full((B, PAD_OUT)),
    )(x, packed_params)
    # Padded W3/b3 columns are exactly zero; real Q-values live in the first A_SIZE lanes.
    return q_pad[:, :A_SIZE]


def init_params(key):
    """PyTorch nn.Linear default init: U(-1/sqrt(fan_in), 1/sqrt(fan_in))."""
    def linear(key, fan_in, fan_out):
        kw, kb = jax.random.split(key)
        bound = 1.0 / jnp.sqrt(fan_in)
        # stored as [in, out] so kernel does x @ W
        w = jax.random.uniform(kw, (fan_in, fan_out), jnp.float32, -bound, bound)
        b = jax.random.uniform(kb, (1, fan_out), jnp.float32, -bound, bound)
        return w, b

    k1, k2, k3 = jax.random.split(key, 3)
    w1, b1 = linear(k1, S_SIZE, HIDDEN)
    w2, b2 = linear(k2, HIDDEN, HIDDEN)
    w3, b3 = linear(k3, HIDDEN, A_SIZE)
    return (w1, b1, w2, b2, w3, b3)


def pack_params(params):
    """Pack all weights/biases into one zero-padded [PACK_ROWS, 128] f32 buffer."""
    w1, b1, w2, b2, w3, b3 = params
    p = jnp.zeros((PACK_ROWS, PAD_OUT), jnp.float32)
    p = p.at[R_W3:R_W3 + HIDDEN, 0:A_SIZE].set(w3)
    p = p.at[R_W2:R_W2 + HIDDEN, 0:HIDDEN].set(w2)
    p = p.at[R_W1:R_W1 + S_SIZE, 0:HIDDEN].set(w1)
    p = p.at[R_B1, 0:HIDDEN].set(b1[0])
    p = p.at[R_B2, 0:HIDDEN].set(b2[0])
    p = p.at[R_B3, 0:A_SIZE].set(b3[0])
    return p


def net_forward_ref(x, params):
    """Pure-JAX reference for correctness check."""
    w1, b1, w2, b2, w3, b3 = params
    h1 = jnp.maximum(x @ w1 + b1, 0.0)
    h2 = jnp.maximum(h1 @ w2 + b2, 0.0)
    return h2 @ w3 + b3


if __name__ == "__main__":
    key = jax.random.PRNGKey(0)
    kp, kx = jax.random.split(key)

    params = init_params(kp)
    packed = pack_params(params)

    B = 8
    x = jax.random.normal(kx, (B, S_SIZE), jnp.float32)

    q = net_forward(x, packed)
    q = jax.block_until_ready(q)

    q_ref = net_forward_ref(x, params)
    assert q.shape == (B, A_SIZE), q.shape
    assert jnp.allclose(q, q_ref, atol=1e-5, rtol=1e-5), "mismatch vs reference"

    print("KERNEL_OK")
</pallas_src>

<mosaic_0001>
module attributes {stable_mosaic.version = 11 : i64} {
  func.func @mlp_kernel(%arg0: memref<8x4xf32, #tpu.memory_space<vmem>>, %arg1: memref<136x128xf32, #tpu.memory_space<vmem>>, %arg2: memref<8x128xf32, #tpu.memory_space<vmem>>) attributes {dimension_semantics = [], scalar_prefetch = 0 : i64, scratch_operands = 0 : i64, tpu.core_type = #tpu.core_type<tc>} {
    %c0 = arith.constant 0 : index
    %c0_0 = arith.constant 0 : index
    %0 = vector.load %arg0[%c0, %c0_0] : memref<8x4xf32, #tpu.memory_space<vmem>>, vector<8x4xf32>
    %c128 = arith.constant 128 : index
    %c0_1 = arith.constant 0 : index
    %1 = vector.load %arg1[%c128, %c0_1] : memref<136x128xf32, #tpu.memory_space<vmem>>, vector<4x64xf32>
    %c132 = arith.constant 132 : index
    %c0_2 = arith.constant 0 : index
    %2 = vector.load %arg1[%c132, %c0_2] : memref<136x128xf32, #tpu.memory_space<vmem>>, vector<1x64xf32>
    %c64 = arith.constant 64 : index
    %c0_3 = arith.constant 0 : index
    %3 = vector.load %arg1[%c64, %c0_3] : memref<136x128xf32, #tpu.memory_space<vmem>>, vector<64x64xf32>
    %c133 = arith.constant 133 : index
    %c0_4 = arith.constant 0 : index
    %4 = vector.load %arg1[%c133, %c0_4] : memref<136x128xf32, #tpu.memory_space<vmem>>, vector<1x64xf32>
    %c0_5 = arith.constant 0 : index
    %c0_6 = arith.constant 0 : index
    %5 = vector.load %arg1[%c0_5, %c0_6] : memref<136x128xf32, #tpu.memory_space<vmem>>, vector<64x128xf32>
    %c134 = arith.constant 134 : index
    %c0_7 = arith.constant 0 : index
    %6 = vector.load %arg1[%c134, %c0_7] : memref<136x128xf32, #tpu.memory_space<vmem>>, vector<1x128xf32>
    %7 = vector.extract_strided_slice %0 {offsets = [0, 0], sizes = [8, 1], strides = [1, 1]} : vector<8x4xf32> to vector<8x1xf32>
    %8 = vector.extract_strided_slice %1 {offsets = [0, 0], sizes = [1, 64], strides = [1, 1]} : vector<4x64xf32> to vector<1x64xf32>
    %9 = vector.broadcast %7 : vector<8x1xf32> to vector<8x64xf32>
    %10 = vector.broadcast %8 : vector<1x64xf32> to vector<8x64xf32>
    %11 = arith.mulf %9, %10 : vector<8x64xf32>
    %12 = vector.broadcast %2 : vector<1x64xf32> to vector<8x64xf32>
    %13 = arith.addf %12, %11 : vector<8x64xf32>
    %14 = vector.extract_strided_slice %0 {offsets = [0, 1], sizes = [8, 1], strides = [1, 1]} : vector<8x4xf32> to vector<8x1xf32>
    %15 = vector.extract_strided_slice %1 {offsets = [1, 0], sizes = [1, 64], strides = [1, 1]} : vector<4x64xf32> to vector<1x64xf32>
    %16 = vector.broadcast %14 : vector<8x1xf32> to vector<8x64xf32>
    %17 = vector.broadcast %15 : vector<1x64xf32> to vector<8x64xf32>
    %18 = arith.mulf %16, %17 : vector<8x64xf32>
    %19 = arith.addf %13, %18 : vector<8x64xf32>
    %20 = vector.extract_strided_slice %0 {offsets = [0, 2], sizes = [8, 1], strides = [1, 1]} : vector<8x4xf32> to vector<8x1xf32>
    %21 = vector.extract_strided_slice %1 {offsets = [2, 0], sizes = [1, 64], strides = [1, 1]} : vector<4x64xf32> to vector<1x64xf32>
    %22 = vector.broadcast %20 : vector<8x1xf32> to vector<8x64xf32>
    %23 = vector.broadcast %21 : vector<1x64xf32> to vector<8x64xf32>
    %24 = arith.mulf %22, %23 : vector<8x64xf32>
    %25 = arith.addf %19, %24 : vector<8x64xf32>
    %26 = vector.extract_strided_slice %0 {offsets = [0, 3], sizes = [8, 1], strides = [1, 1]} : vector<8x4xf32> to vector<8x1xf32>
    %27 = vector.extract_strided_slice %1 {offsets = [3, 0], sizes = [1, 64], strides = [1, 1]} : vector<4x64xf32> to vector<1x64xf32>
    %28 = vector.broadcast %26 : vector<8x1xf32> to vector<8x64xf32>
    %29 = vector.broadcast %27 : vector<1x64xf32> to vector<8x64xf32>
    %30 = arith.mulf %28, %29 : vector<8x64xf32>
    %31 = arith.addf %25, %30 : vector<8x64xf32>
    %cst = arith.constant 0.000000e+00 : f32
    %32 = vector.broadcast %cst : f32 to vector<8x64xf32>
    %33 = arith.maximumf %31, %32 : vector<8x64xf32>
    %cst_8 = arith.constant dense<0.000000e+00> : vector<8x64xf32>
    %34 = tpu.matmul %33, %3, %cst_8 {dimension_numbers = #tpu.dot_dimension_numbers<[1], [0], [0], [1], [0, 0, 1, 1], [], []>} : vector<8x64xf32>, vector<64x64xf32>, vector<8x64xf32> -> vector<8x64xf32>
    %35 = vector.broadcast %4 : vector<1x64xf32> to vector<8x64xf32>
    %36 = arith.addf %34, %35 : vector<8x64xf32>
    %cst_9 = arith.constant 0.000000e+00 : f32
    %37 = vector.broadcast %cst_9 : f32 to vector<8x64xf32>
    %38 = arith.maximumf %36, %37 : vector<8x64xf32>
    %cst_10 = arith.constant dense<0.000000e+00> : vector<8x128xf32>
    %39 = tpu.matmul %38, %5, %cst_10 {dimension_numbers = #tpu.dot_dimension_numbers<[1], [0], [0], [1], [0, 0, 1, 1], [], []>} : vector<8x64xf32>, vector<64x128xf32>, vector<8x128xf32> -> vector<8x128xf32>
    %40 = vector.broadcast %6 : vector<1x128xf32> to vector<8x128xf32>
    %41 = arith.addf %39, %40 : vector<8x128xf32>
    %c0_11 = arith.constant 0 : index
    %c0_12 = arith.constant 0 : index
    %42 = vector.load %arg2[%c0_11, %c0_12] : memref<8x128xf32, #tpu.memory_space<vmem>>, vector<8x128xf32>
    tpu.vector_store %arg2[%c0_11, %c0_12], %41 {strides = array<i32>} : memref<8x128xf32, #tpu.memory_space<vmem>>, vector<8x128xf32>,
    return
  }
}

</mosaic_0001>

<llo_original>
// kernel: tpu_custom_call.1
$region0: #{tpu_custom_call.1}
  #allocation0 [shape = 'u32[]', space=smem, size = 0x4, offset = 0x4, fixed_abs, tag = 'smem constant byte address 0x4 - core index']
  #allocation1 [shape = 'u32[144,128]{1,0:T(1,128)}', space=vmem, size = 0x12000, scoped, tag = 'internal scratch']
  %s0 = inlined_call_operand.vmem [shape: f32[8,4], index: 0, kind: input, shape index: {}]
  %s1 = inlined_call_operand.hbm [shape: f32[136,128], index: 1, kind: input, shape index: {}]
  %s2 = inlined_call_operand.hbm [shape: f32[8,128], index: 2, kind: output, shape index: {}]
  %s3 = sld [smem:[#allocation0]]
  $region22: #{tpu_custom_call.1} parent=0
    _
  %s5 = ssub.s32 1, %s3
  %s6 = scalar_select 0, %s5, %s3
  $region1: #{tpu_custom_call.1} parent=0
    #allocation2 [shape = 'u8[69632]{0}', space=vmem, size = 0x11000, scoped, tag = 'input window, operand 1, single buffered']
    #allocation3 [shape = 's32[1]{0}', space=sflag, size = 0x4, scoped, tag = 'scoped memory for tpu_custom_call.1']
    #allocation4 [shape = 's32[1]{0}', space=sflag, size = 0x4, scoped, tag = 'scoped memory for tpu_custom_call.1']
    #allocation5 [shape = 'u8[4096]{0}', space=vmem, size = 0x1000, scoped, tag = 'output window, operand 0, single buffered']
    %7 = vsyncpa [#allocation3], 0
    %8 = vsyncpa [#allocation4], 0
    // Predicated region
    $region2: #{tpu_custom_call.1} parent=1 // pred_check
      _
    $region3: #{tpu_custom_call.1} parent=1 // pred_check_branch
      %10 = sbr.rel (0) target = $region5
    $region4: #{tpu_custom_call.1} parent=1 // pred_region
      _
    $region5: #{tpu_custom_call.1} parent=1 // pred_fallthru
      _
    // Predicated region
    $region6: #{tpu_custom_call.1} parent=1 // pred_check
      _
    $region7: #{tpu_custom_call.1} parent=1 // pred_check_branch
      %12 = sbr.rel (0) target = $region9
    $region8: #{tpu_custom_call.1} parent=1 // pred_region
      %s14 = ssub.s32 2176, 2176
      %15 = vsyncadd [#allocation3], %s14
      %s16 = sshll.u32 [#allocation2], 4
      %s17 = int_to_ptr.vmem [resolvable:$true] %s16
      %22 = dma.hbm_to_vmem [thread:$0]  %s1, 2176, %s17, [#allocation3], 128, 128, 8
    $region9: #{tpu_custom_call.1} parent=1 // pred_fallthru
      _
    // Predicated region
    $region10: #{tpu_custom_call.1} parent=1 // pred_check
      _
    $region11: #{tpu_custom_call.1} parent=1 // pred_check_branch
      %24 = sbr.rel (0) target = $region13
    $region12: #{tpu_custom_call.1} parent=1 // pred_region
      %25 = dma.done [#allocation3], 2176
    $region13: #{tpu_custom_call.1} parent=1 // pred_fallthru
      _
    %v26 = vld [vmem:[%s0] sm:$0xff]
    %v27 = vld [vmem:[#allocation2 + $0x80] sm:$0xf]
    %v28 = vld [vmem:[#allocation2 + $0x84] sm:$0x1]
    %v29 = vld [vmem:[#allocation2 + $0x40] sm:$0xff]
    %v30 = vld [vmem:[#allocation2 + $0x48] sm:$0xff]
    %v31 = vld [vmem:[#allocation2 + $0x50] sm:$0xff]
    %v32 = vld [vmem:[#allocation2 + $0x58] sm:$0xff]
    %v33 = vld [vmem:[#allocation2 + $0x60] sm:$0xff]
    %v34 = vld [vmem:[#allocation2 + $0x68] sm:$0xff]
    %v35 = vld [vmem:[#allocation2 + $0x70] sm:$0xff]
    %v36 = vld [vmem:[#allocation2 + $0x78] sm:$0xff]
    %v37 = vld [vmem:[#allocation2 + $0x85] sm:$0x1]
    %v38 = vld [vmem:[#allocation2] sm:$0xff]
    %v39 = vld [vmem:[#allocation2 + $0x8] sm:$0xff]
    %v40 = vld [vmem:[#allocation2 + $0x10] sm:$0xff]
    %v41 = vld [vmem:[#allocation2 + $0x18] sm:$0xff]
    %v42 = vld [vmem:[#allocation2 + $0x20] sm:$0xff]
    %v43 = vld [vmem:[#allocation2 + $0x28] sm:$0xff]
    %v44 = vld [vmem:[#allocation2 + $0x30] sm:$0xff]
    %v45 = vld [vmem:[#allocation2 + $0x38] sm:$0xff]
    %v46 = vld [vmem:[#allocation2 + $0x86] sm:$0x1]
    %48 = vset.pattern.permute.xlu0 0
    %49 = vperm.xlu0 %48, %v26
    %v50 = vpop.permute.xlu0 %49
    %v52 = vlaneseq
    %v53 = vshrl.u32 %v52, 7
    %v54 = vsub.s32 0, %v53
    %v55 = vrot.slane %v27, %v54
    %v56 = vmul.f32 %v50, %v55
    %v57 = vlaneseq
    %v58 = vshrl.u32 %v57, 7
    %v59 = vsub.s32 0, %v58
    %v60 = vrot.slane %v28, %v59
    %v61 = vadd.f32 %v60, %v56
    %62 = vset.pattern.permute.xlu0 1
    %63 = vperm.xlu0 %62, %v26
    %v64 = vpop.permute.xlu0 %63
    %v66 = vlaneseq
    %v67 = vshrl.u32 %v66, 7
    %v68 = vsub.s32 1, %v67
    %v69 = vrot.slane %v27, %v68
    %v70 = vmul.f32 %v64, %v69
    %v71 = vadd.f32 %v61, %v70
    %72 = vset.pattern.permute.xlu0 2
    %73 = vperm.xlu0 %72, %v26
    %v74 = vpop.permute.xlu0 %73
    %v76 = vlaneseq
    %v77 = vshrl.u32 %v76, 7
    %v78 = vsub.s32 2, %v77
    %v79 = vrot.slane %v27, %v78
    %v80 = vmul.f32 %v74, %v79
    %v81 = vadd.f32 %v71, %v80
    %82 = vset.pattern.permute.xlu0 3
    %83 = vperm.xlu0 %82, %v26
    %v84 = vpop.permute.xlu0 %83
    %v86 = vlaneseq
    %v87 = vshrl.u32 %v86, 7
    %v88 = vsub.s32 3, %v87
    %v89 = vrot.slane %v27, %v88
    %v90 = vmul.f32 %v84, %v89
    %v91 = vadd.f32 %v81, %v90
    %v92 = vmax.f32 %v91, 0.0
    %v93 = vlaneseq
    %v94 = vshrl.u32 %v93, 7
    %v95 = vsub.s32 0, %v94
    %v96 = vrot.slane %v37, %v95
    %vm97 = vcmask 523264
    %v99 = vsel %vm97, %v92, 0
    %101 = vmatprep.subr.mxu0 0.0
    %102 = vmatpush1.msra.mxu0 %v29
    %103 = vmatprep.subr.mxu0 0.0
    %104 = vmatpush1.msra.mxu0 %v30
    %105 = vmatprep.subr.mxu0 0.0
    %106 = vmatpush1.msra.mxu0 %v31
    %107 = vmatprep.subr.mxu0 0.0
    %108 = vmatpush1.msra.mxu0 %v32
    %109 = vmatprep.subr.mxu0 0.0
    %110 = vmatpush1.msra.mxu0 %v33
    %111 = vmatprep.subr.mxu0 0.0
    %112 = vmatpush1.msra.mxu0 %v34
    %113 = vmatprep.subr.mxu0 0.0
    %114 = vmatpush1.msra.mxu0 %v35
    %115 = vmatprep.subr.mxu0 0.0
    %116 = vmatpush1.msra.mxu0 %v36
    %117 = vmatprep.subr.mxu0 0.0
    %118 = vmatpush1.msra.mxu0 0.0
    %119 = vmatprep.subr.mxu0 0.0
    %120 = vmatpush1.msra.mxu0 0.0
    %121 = vmatprep.subr.mxu0 0.0
    %122 = vmatpush1.msra.mxu0 0.0
    %123 = vmatprep.subr.mxu0 0.0
    %124 = vmatpush1.msra.mxu0 0.0
    %125 = vmatprep.subr.mxu0 0.0
    %126 = vmatpush1.msra.mxu0 0.0
    %127 = vmatprep.subr.mxu0 0.0
    %128 = vmatpush1.msra.mxu0 0.0
    %129 = vmatprep.subr.mxu0 0.0
    %130 = vmatpush1.msra.mxu0 0.0
    %131 = vmatprep.subr.mxu0 0.0
    %132 = vmatpush1.msra.mxu0 0.0
    %133 = vmatprep.subr.mxu0 0.0
    %134 = vmatpush1.msra.mxu0 0.0
    %135 = vmatprep.subr.mxu0 0.0
    %136 = vmatpush1.msra.mxu0 0.0
    %137 = vmatprep.subr.mxu0 0.0
    %138 = vmatpush1.msra.mxu0 0.0
    %139 = vmatprep.subr.mxu0 0.0
    %140 = vmatpush1.msra.mxu0 0.0
    %141 = vmatprep.subr.mxu0 0.0
    %142 = vmatpush1.msra.mxu0 0.0
    %143 = vmatprep.subr.mxu0 0.0
    %144 = vmatpush1.msra.mxu0 0.0
    %145 = vmatprep.subr.mxu0 0.0
    %146 = vmatpush1.msra.mxu0 0.0
    %147 = vmatprep.subr.mxu0 0.0
    %148 = vmatpush1.msra.mxu0 0.0
    %149 = vmatprep.subr.mxu0 0.0
    %150 = vmatpush1.msra.mxu0 0.0
    %151 = vmatprep.subr.mxu0 0.0
    %152 = vmatpush1.msra.mxu0 0.0
    %153 = vmatprep.subr.mxu0 0.0
    %154 = vmatpush1.msra.mxu0 0.0
    %155 = vmatprep.subr.mxu0 0.0
    %156 = vmatpush1.msra.mxu0 0.0
    %157 = vmatprep.subr.mxu0 0.0
    %158 = vmatpush1.msra.mxu0 0.0
    %159 = vmatprep.subr.mxu0 0.0
    %160 = vmatpush1.msra.mxu0 0.0
    %161 = vmatprep.subr.mxu0 0.0
    %162 = vmatpush1.msra.mxu0 0.0
    %163 = vmatprep.subr.mxu0 0.0
    %164 = vmatpush1.msra.mxu0 0.0
    %165 = vmatprep.mubr.f32.mxu0 0.0
    %166 = vmatmul.mubr.f32.gmra.mrb[0].mxu0 %v99
    %v167 = vpop.f32.mrb[0].mxu0
    %v168 = vadd.f32 %v96, %v167
    %v169 = vpop.f32.mrb[0].mxu0
    %170 = vdwg.mxu0
    %v171 = vmax.f32 %v168, 0.0
    %v172 = vlaneseq
    %v173 = vshrl.u32 %v172, 7
    %v174 = vsub.s32 0, %v173
    %v175 = vrot.slane %v46, %v174
    %v177 = vsel %vm97, %v171, 0
    %179 = vmatprep.subr.mxu0 0.0
    %180 = vmatpush1.msra.mxu0 %v38
    %181 = vmatprep.subr.mxu0 0.0
    %182 = vmatpush1.msra.mxu0 %v39
    %183 = vmatprep.subr.mxu0 0.0
    %184 = vmatpush1.msra.mxu0 %v40
    %185 = vmatprep.subr.mxu0 0.0
    %186 = vmatpush1.msra.mxu0 %v41
    %187 = vmatprep.subr.mxu0 0.0
    %188 = vmatpush1.msra.mxu0 %v42
    %189 = vmatprep.subr.mxu0 0.0
    %190 = vmatpush1.msra.mxu0 %v43
    %191 = vmatprep.subr.mxu0 0.0
    %192 = vmatpush1.msra.mxu0 %v44
    %193 = vmatprep.subr.mxu0 0.0
    %194 = vmatpush1.msra.mxu0 %v45
    %195 = vmatprep.subr.mxu0 0.0
    %196 = vmatpush1.msra.mxu0 0.0
    %197 = vmatprep.subr.mxu0 0.0
    %198 = vmatpush1.msra.mxu0 0.0
    %199 = vmatprep.subr.mxu0 0.0
    %200 = vmatpush1.msra.mxu0 0.0
    %201 = vmatprep.subr.mxu0 0.0
    %202 = vmatpush1.msra.mxu0 0.0
    %203 = vmatprep.subr.mxu0 0.0
    %204 = vmatpush1.msra.mxu0 0.0
    %205 = vmatprep.subr.mxu0 0.0
    %206 = vmatpush1.msra.mxu0 0.0
    %207 = vmatprep.subr.mxu0 0.0
    %208 = vmatpush1.msra.mxu0 0.0
    %209 = vmatprep.subr.mxu0 0.0
    %210 = vmatpush1.msra.mxu0 0.0
    %211 = vmatprep.subr.mxu0 0.0
    %212 = vmatpush1.msra.mxu0 0.0
    %213 = vmatprep.subr.mxu0 0.0
    %214 = vmatpush1.msra.mxu0 0.0
    %215 = vmatprep.subr.mxu0 0.0
    %216 = vmatpush1.msra.mxu0 0.0
    %217 = vmatprep.subr.mxu0 0.0
    %218 = vmatpush1.msra.mxu0 0.0
    %219 = vmatprep.subr.mxu0 0.0
    %220 = vmatpush1.msra.mxu0 0.0
    %221 = vmatprep.subr.mxu0 0.0
    %222 = vmatpush1.msra.mxu0 0.0
    %223 = vmatprep.subr.mxu0 0.0
    %224 = vmatpush1.msra.mxu0 0.0
    %225 = vmatprep.subr.mxu0 0.0
    %226 = vmatpush1.msra.mxu0 0.0
    %227 = vmatprep.subr.mxu0 0.0
    %228 = vmatpush1.msra.mxu0 0.0
    %229 = vmatprep.subr.mxu0 0.0
    %230 = vmatpush1.msra.mxu0 0.0
    %231 = vmatprep.subr.mxu0 0.0
    %232 = vmatpush1.msra.mxu0 0.0
    %233 = vmatprep.subr.mxu0 0.0
    %234 = vmatpush1.msra.mxu0 0.0
    %235 = vmatprep.subr.mxu0 0.0
    %236 = vmatpush1.msra.mxu0 0.0
    %237 = vmatprep.subr.mxu0 0.0
    %238 = vmatpush1.msra.mxu0 0.0
    %239 = vmatprep.subr.mxu0 0.0
    %240 = vmatpush1.msra.mxu0 0.0
    %241 = vmatprep.subr.mxu0 0.0
    %242 = vmatpush1.msra.mxu0 0.0
    %243 = vmatprep.mubr.f32.mxu0 0.0
    %244 = vmatmul.mubr.f32.gmra.mrb[0].mxu0 %v177
    %v245 = vpop.f32.mrb[0].mxu0
    %v246 = vadd.f32 %v175, %v245
    %v247 = vpop.f32.mrb[0].mxu0
    %248 = vdwg.mxu0
    %249 = vst [vmem:[#allocation5] sm:$0xff] %v246
    // Predicated region
    $region14: #{tpu_custom_call.1} parent=1 // pred_check
      _
    $region15: #{tpu_custom_call.1} parent=1 // pred_check_branch
      %251 = sbr.rel (0) target = $region17
    $region16: #{tpu_custom_call.1} parent=1 // pred_region
      %s253 = ssub.s32 128, 128
      %254 = vsyncadd [#allocation4], %s253
      %s256 = sshll.u32 [#allocation5], 4
      %s257 = int_to_ptr.vmem [resolvable:$true] %s256
      %259 = dma.vmem_to_hbm [thread:$0]  %s257, 128, %s2, [#allocation4]
    $region17: #{tpu_custom_call.1} parent=1 // pred_fallthru
      _
    // Predicated region
    $region18: #{tpu_custom_call.1} parent=1 // pred_check
      _
    $region19: #{tpu_custom_call.1} parent=1 // pred_check_branch
      %261 = sbr.rel (0) target = $region21
    $region20: #{tpu_custom_call.1} parent=1 // pred_region
      %262 = dma.done [#allocation4], 128
    $region21: #{tpu_custom_call.1} parent=1 // pred_fallthru
      _
    %263 = vsyncpa [#allocation3], 1
    %264 = vsyncpa [#allocation4], 1

</llo_original>
